<compile_context>
chip_gen: v7x
topology: tpu7x:2x2x1
jax: 0.10.0
libtpu: 0.0.40
codegen_flags: <defaults>
</compile_context>

<pallas_src>
import functools

import jax
import jax.numpy as jnp
from jax.experimental import pallas as pl
from jax.experimental.pallas import tpu as pltpu

H1, H2, H_PAD = 64, 32, 128  # true hidden widths; padded lane width


def _round_up(n, m):
    return ((n + m - 1) // m) * m


def titanic_mlp_kernel(x_ref, w1_ref, b1_ref, w2_ref, b2_ref, w3_ref, b3_ref, o_ref):
    # fc1 + ReLU  (padded hidden lanes: 0*x + 0 -> ReLU -> 0)
    h1 = jnp.dot(x_ref[...], w1_ref[...], preferred_element_type=jnp.float32)
    h1 = jnp.maximum(h1 + b1_ref[...], 0.0)
    # fc2 + ReLU
    h2 = jnp.dot(h1, w2_ref[...], preferred_element_type=jnp.float32)
    h2 = jnp.maximum(h2 + b2_ref[...], 0.0)
    # fc3 + Sigmoid on the VPU/XLU: broadcast-multiply by the w3 row, lane-sum -> (TM, 1).
    # Padded lanes of both h2 and w3 are zero, so they contribute nothing.
    z = jnp.sum(h2 * w3_ref[...], axis=-1, keepdims=True) + b3_ref[...]
    o_ref[...] = jax.nn.sigmoid(z)


def prepare_params(params):
    """One-time preprocessing: transpose PyTorch (out,in) weights to (in,out) and zero-pad
    hidden widths to 128 lanes. Math is unchanged (padded columns are zero)."""
    f32 = jnp.float32
    in_features = params["w1"].shape[1]
    w1 = jnp.zeros((in_features, H_PAD), f32).at[:, :H1].set(params["w1"].T.astype(f32))
    b1 = jnp.zeros((1, H_PAD), f32).at[0, :H1].set(params["b1"].astype(f32))
    w2 = jnp.zeros((H_PAD, H_PAD), f32).at[:H1, :H2].set(params["w2"].T.astype(f32))
    b2 = jnp.zeros((1, H_PAD), f32).at[0, :H2].set(params["b2"].astype(f32))
    # fc3 weight as a (1, H_PAD) row for the VPU mul + lane-sum; bias as a (1, 1) scalar tile.
    w3 = jnp.zeros((1, H_PAD), f32).at[0, :H2].set(params["w3"][0].astype(f32))
    b3 = params["b3"].astype(f32).reshape(1, 1)
    return {"w1": w1, "b1": b1, "w2": w2, "b2": b2, "w3": w3, "b3": b3}


@functools.partial(jax.jit, static_argnames=("tm",))
def titanic_forward(x, prep, *, tm=8192):
    """x: (B, F) float32. prep: output of prepare_params(). Returns (B, 1) float32."""
    B, F = x.shape
    # Batch tile: multiple of 8 sublanes, capped so the grid keeps >=~4 steps when B is large
    # (megacore on v7x + DMA/compute pipelining), but never larger than the requested tm.
    tm_eff = max(8, min(tm, _round_up(-(-B // 4), 8)))
    grid = (pl.cdiv(B, tm_eff),)  # partial last block is masked by Pallas; no jnp.pad needed.

    # Advisory cost hint reflecting the actual DMA'd bytes and the padded compute.
    cost = pl.CostEstimate(
        flops=2 * B * (F * H_PAD + H_PAD * H_PAD + H_PAD),
        transcendentals=B,
        bytes_accessed=4 * (B * F + B
                            + F * H_PAD + H_PAD          # w1, b1
                            + H_PAD * H_PAD + H_PAD      # w2, b2
                            + H_PAD + 1),                # w3 row, b3
    )

    resident = lambda shape: pl.BlockSpec(shape, lambda i: (0, 0))  # weights stay in VMEM
    out = pl.pallas_call(
        titanic_mlp_kernel,
        out_shape=jax.ShapeDtypeStruct((B, 1), jnp.float32),
        grid=grid,
        in_specs=[
            pl.BlockSpec((tm_eff, F), lambda i: (i, 0)),   # x tile (pipelined over batch)
            resident((F, H_PAD)),                          # w1
            resident((1, H_PAD)),                          # b1
            resident((H_PAD, H_PAD)),                      # w2
            resident((1, H_PAD)),                          # b2
            resident((1, H_PAD)),                          # w3 row
            resident((1, 1)),                              # b3 scalar
        ],
        out_specs=pl.BlockSpec((tm_eff, 1), lambda i: (i, 0)),  # narrow (B,1) output, no re-slice
        compiler_params=pltpu.CompilerParams(
            dimension_semantics=("parallel",),             # megacore sharding on v7x
        ),
        cost_estimate=cost,
    )(x, prep["w1"], prep["b1"], prep["w2"], prep["b2"], prep["w3"], prep["b3"])
    return out


def init_params(key, in_features):
    """Deterministic parameter init matching the module's layer shapes (PyTorch convention)."""
    k1, k2, k3, k4, k5, k6 = jax.random.split(key, 6)
    scale = 0.1
    return {
        "w1": scale * jax.random.normal(k1, (H1, in_features), jnp.float32),
        "b1": scale * jax.random.normal(k2, (H1,), jnp.float32),
        "w2": scale * jax.random.normal(k3, (H2, H1), jnp.float32),
        "b2": scale * jax.random.normal(k4, (H2,), jnp.float32),
        "w3": scale * jax.random.normal(k5, (1, H2), jnp.float32),
        "b3": scale * jax.random.normal(k6, (1,), jnp.float32),
    }


def reference_forward(x, params):
    h1 = jnp.maximum(x @ params["w1"].T + params["b1"], 0.0)
    h2 = jnp.maximum(h1 @ params["w2"].T + params["b2"], 0.0)
    return jax.nn.sigmoid(h2 @ params["w3"].T + params["b3"])


if __name__ == "__main__":
    key = jax.random.PRNGKey(0)
    kx, kp = jax.random.split(key)

    batch, features = 8, 8  # Titanic-style tabular input: (batch, num_features)
    x = jax.random.normal(kx, (batch, features), jnp.float32)
    params = init_params(kp, features)

    prep = prepare_params(params)  # one-time transpose + lane padding (hoisted out of the call)
    out = jax.block_until_ready(titanic_forward(x, prep))

    ref = reference_forward(x, params)
    assert out.shape == (batch, 1)
    assert jnp.allclose(out, ref, atol=1e-5, rtol=1e-5), "mismatch vs pure-JAX reference"

    print("KERNEL_OK")
</pallas_src>

<mosaic_0001>
module attributes {stable_mosaic.version = 11 : i64} {
  func.func @titanic_mlp_kernel(%arg0: i32, %arg1: memref<8x8xf32, #tpu.memory_space<vmem>>, %arg2: memref<8x128xf32, #tpu.memory_space<vmem>>, %arg3: memref<1x128xf32, #tpu.memory_space<vmem>>, %arg4: memref<128x128xf32, #tpu.memory_space<vmem>>, %arg5: memref<1x128xf32, #tpu.memory_space<vmem>>, %arg6: memref<1x128xf32, #tpu.memory_space<vmem>>, %arg7: memref<1x1xf32, #tpu.memory_space<vmem>>, %arg8: memref<8x1xf32, #tpu.memory_space<vmem>>) attributes {dimension_semantics = [#tpu.dimension_semantics<parallel>], iteration_bounds = array<i64: 1>, scalar_prefetch = 0 : i64, scratch_operands = 0 : i64, tpu.core_type = #tpu.core_type<tc>, window_params = [{transform_indices = @transform_0, window_bounds = array<i64: 8, 8>}, {pipeline_mode = #tpu.pipeline_mode<synchronous>, transform_indices = @transform_1, window_bounds = array<i64: 8, 128>}, {pipeline_mode = #tpu.pipeline_mode<synchronous>, transform_indices = @transform_2, window_bounds = array<i64: 1, 128>}, {pipeline_mode = #tpu.pipeline_mode<synchronous>, transform_indices = @transform_3, window_bounds = array<i64: 128, 128>}, {pipeline_mode = #tpu.pipeline_mode<synchronous>, transform_indices = @transform_4, window_bounds = array<i64: 1, 128>}, {pipeline_mode = #tpu.pipeline_mode<synchronous>, transform_indices = @transform_5, window_bounds = array<i64: 1, 128>}, {pipeline_mode = #tpu.pipeline_mode<synchronous>, transform_indices = @transform_6, window_bounds = array<i64: 1, 1>}, {transform_indices = @transform_7, window_bounds = array<i64: 8, 1>}]} {
    %c0 = arith.constant 0 : index
    %c0_0 = arith.constant 0 : index
    %0 = vector.load %arg1[%c0, %c0_0] : memref<8x8xf32, #tpu.memory_space<vmem>>, vector<8x8xf32>
    %c0_1 = arith.constant 0 : index
    %c0_2 = arith.constant 0 : index
    %1 = vector.load %arg2[%c0_1, %c0_2] : memref<8x128xf32, #tpu.memory_space<vmem>>, vector<8x128xf32>
    %cst = arith.constant dense<0.000000e+00> : vector<8x128xf32>
    %2 = tpu.matmul %0, %1, %cst {dimension_numbers = #tpu.dot_dimension_numbers<[1], [0], [0], [1], [0, 0, 1, 1], [], []>} : vector<8x8xf32>, vector<8x128xf32>, vector<8x128xf32> -> vector<8x128xf32>
    %c0_3 = arith.constant 0 : index
    %c0_4 = arith.constant 0 : index
    %3 = vector.load %arg3[%c0_3, %c0_4] : memref<1x128xf32, #tpu.memory_space<vmem>>, vector<1x128xf32>
    %4 = vector.broadcast %3 : vector<1x128xf32> to vector<8x128xf32>
    %5 = arith.addf %2, %4 : vector<8x128xf32>
    %cst_5 = arith.constant 0.000000e+00 : f32
    %6 = vector.broadcast %cst_5 : f32 to vector<8x128xf32>
    %7 = arith.maximumf %5, %6 : vector<8x128xf32>
    %c0_6 = arith.constant 0 : index
    %c0_7 = arith.constant 0 : index
    %8 = vector.load %arg4[%c0_6, %c0_7] : memref<128x128xf32, #tpu.memory_space<vmem>>, vector<128x128xf32>
    %cst_8 = arith.constant dense<0.000000e+00> : vector<8x128xf32>
    %9 = tpu.matmul %7, %8, %cst_8 {dimension_numbers = #tpu.dot_dimension_numbers<[1], [0], [0], [1], [0, 0, 1, 1], [], []>} : vector<8x128xf32>, vector<128x128xf32>, vector<8x128xf32> -> vector<8x128xf32>
    %c0_9 = arith.constant 0 : index
    %c0_10 = arith.constant 0 : index
    %10 = vector.load %arg5[%c0_9, %c0_10] : memref<1x128xf32, #tpu.memory_space<vmem>>, vector<1x128xf32>
    %11 = vector.broadcast %10 : vector<1x128xf32> to vector<8x128xf32>
    %12 = arith.addf %9, %11 : vector<8x128xf32>
    %cst_11 = arith.constant 0.000000e+00 : f32
    %13 = vector.broadcast %cst_11 : f32 to vector<8x128xf32>
    %14 = arith.maximumf %12, %13 : vector<8x128xf32>
    %c0_12 = arith.constant 0 : index
    %c0_13 = arith.constant 0 : index
    %15 = vector.load %arg6[%c0_12, %c0_13] : memref<1x128xf32, #tpu.memory_space<vmem>>, vector<1x128xf32>
    %16 = vector.broadcast %15 : vector<1x128xf32> to vector<8x128xf32>
    %17 = arith.mulf %14, %16 : vector<8x128xf32>
    %cst_14 = arith.constant dense<0.000000e+00> : vector<8xf32>
    %18 = vector.multi_reduction <add>, %17, %cst_14 [1] : vector<8x128xf32> to vector<8xf32>
    %19 = vector.shape_cast %18 : vector<8xf32> to vector<8x1xf32>
    %c0_15 = arith.constant 0 : index
    %c0_16 = arith.constant 0 : index
    %20 = vector.load %arg7[%c0_15, %c0_16] : memref<1x1xf32, #tpu.memory_space<vmem>>, vector<1x1xf32>
    %21 = vector.broadcast %20 : vector<1x1xf32> to vector<8x1xf32>
    %22 = arith.addf %19, %21 : vector<8x1xf32>
    %23 = arith.negf %22 : vector<8x1xf32>
    %24 = math.exp %23 : vector<8x1xf32>
    %cst_17 = arith.constant 1.000000e+00 : f32
    %25 = vector.broadcast %cst_17 : f32 to vector<8x1xf32>
    %26 = arith.addf %25, %24 : vector<8x1xf32>
    %27 = arith.divf %25, %26 : vector<8x1xf32>
    %c0_18 = arith.constant 0 : index
    %c0_19 = arith.constant 0 : index
    %28 = vector.load %arg8[%c0_18, %c0_19] : memref<8x1xf32, #tpu.memory_space<vmem>>, vector<8x1xf32>
    tpu.vector_store %arg8[%c0_18, %c0_19], %27 {strides = array<i32>} : memref<8x1xf32, #tpu.memory_space<vmem>>, vector<8x1xf32>,
    return
  }
  func.func @transform_0(%arg0: i32) -> (i32, i32) {
    %c0_i32 = arith.constant 0 : i32
    %c0_i32_0 = arith.constant 0 : i32
    return %arg0, %c0_i32 : i32, i32
  }
  func.func @transform_1(%arg0: i32) -> (i32, i32) {
    %c0_i32 = arith.constant 0 : i32
    %c0_i32_0 = arith.constant 0 : i32
    %c0_i32_1 = arith.constant 0 : i32
    return %c0_i32, %c0_i32_0 : i32, i32
  }
  func.func @transform_2(%arg0: i32) -> (i32, i32) {
    %c0_i32 = arith.constant 0 : i32
    %c0_i32_0 = arith.constant 0 : i32
    %c0_i32_1 = arith.constant 0 : i32
    return %c0_i32, %c0_i32_0 : i32, i32
  }
  func.func @transform_3(%arg0: i32) -> (i32, i32) {
    %c0_i32 = arith.constant 0 : i32
    %c0_i32_0 = arith.constant 0 : i32
    %c0_i32_1 = arith.constant 0 : i32
    return %c0_i32, %c0_i32_0 : i32, i32
  }
  func.func @transform_4(%arg0: i32) -> (i32, i32) {
    %c0_i32 = arith.constant 0 : i32
    %c0_i32_0 = arith.constant 0 : i32
    %c0_i32_1 = arith.constant 0 : i32
    return %c0_i32, %c0_i32_0 : i32, i32
  }
  func.func @transform_5(%arg0: i32) -> (i32, i32) {
    %c0_i32 = arith.constant 0 : i32
    %c0_i32_0 = arith.constant 0 : i32
    %c0_i32_1 = arith.constant 0 : i32
    return %c0_i32, %c0_i32_0 : i32, i32
  }
  func.func @transform_6(%arg0: i32) -> (i32, i32) {
    %c0_i32 = arith.constant 0 : i32
    %c0_i32_0 = arith.constant 0 : i32
    %c0_i32_1 = arith.constant 0 : i32
    return %c0_i32, %c0_i32_0 : i32, i32
  }
  func.func @transform_7(%arg0: i32) -> (i32, i32) {
    %c0_i32 = arith.constant 0 : i32
    %c0_i32_0 = arith.constant 0 : i32
    return %arg0, %c0_i32 : i32, i32
  }
}

</mosaic_0001>

<llo_original>
// kernel: titanic_forward.1
$region0: #{titanic_forward.1}
  #allocation0 [shape = 'u32[]', space=smem, size = 0x4, offset = 0x4, fixed_abs, tag = 'smem constant byte address 0x4 - core index']
  #allocation1 [shape = 'u32[144,128]{1,0:T(1,128)}', space=vmem, size = 0x12000, scoped, tag = 'internal scratch']
  #allocation2 [shape = 'f32[1,1]{1,0:T(1,128)S(1)}', space=vmem, size = 0x200, scoped, tag = 'scoped memory for titanic_forward.1']
  %s0 = inlined_call_operand.hbm [shape: f32[8,8], index: 0, kind: input, shape index: {}]
  %s1 = inlined_call_operand.vmem [shape: f32[8,128], index: 1, kind: input, shape index: {}]
  %s2 = inlined_call_operand.vmem [shape: f32[1,128], index: 2, kind: input, shape index: {}]
  %s3 = inlined_call_operand.hbm [shape: f32[128,128], index: 3, kind: input, shape index: {}]
  %s4 = inlined_call_operand.vmem [shape: f32[1,128], index: 4, kind: input, shape index: {}]
  %s5 = inlined_call_operand.vmem [shape: f32[1,128], index: 5, kind: input, shape index: {}]
  %s6 = inlined_call_operand.<no memory space> [shape: f32[1,1], index: 6, kind: input, shape index: {}]
  %s7 = inlined_call_operand.vmem [shape: f32[8,1], index: 7, kind: output, shape index: {}]
  %s8 = sld [smem:[#allocation0]]
  $region46: #{titanic_forward.1} parent=0
    _
  %s10 = ssub.s32 1, %s8
  %s11 = scalar_select 0, %s10, %s8
  %v12 = vstv %s6
  %13 = vst [vmem:[#allocation2] sm:$0x1] %v12
  $region1: #{titanic_forward.1} parent=0
    #allocation3 [shape = 'u8[4096]{0}', space=vmem, size = 0x1000, scoped, tag = 'input window, operand 0, single buffered']
    #allocation4 [shape = 's32[1]{0}', space=sflag, size = 0x4, scoped, tag = 'scoped memory for titanic_forward.1']
    #allocation5 [shape = 'u8[65536]{0}', space=vmem, size = 0x10000, scoped, tag = 'input window, operand 3, single buffered']
    #allocation6 [shape = 's32[1]{0}', space=sflag, size = 0x4, scoped, tag = 'scoped memory for titanic_forward.1']
    %14 = vsyncpa [#allocation4], 0
    %15 = vsyncpa [#allocation6], 0
    // Predicated region
    $region2: #{titanic_forward.1} parent=1 // pred_check
      _
    $region3: #{titanic_forward.1} parent=1 // pred_check_branch
      %17 = sbr.rel (0) target = $region5
    $region4: #{titanic_forward.1} parent=1 // pred_region
      %s19 = ssub.s32 128, 128
      %20 = vsyncadd [#allocation4], %s19
      %s22 = sshll.u32 [#allocation3], 4
      %s23 = int_to_ptr.vmem [resolvable:$true] %s22
      %25 = dma.hbm_to_vmem [thread:$0]  %s0, 128, %s23, [#allocation4]
    $region5: #{titanic_forward.1} parent=1 // pred_fallthru
      _
    // Predicated region
    $region6: #{titanic_forward.1} parent=1 // pred_check
      _
    $region7: #{titanic_forward.1} parent=1 // pred_check_branch
      %27 = sbr.rel (0) target = $region9
    $region8: #{titanic_forward.1} parent=1 // pred_region
      _
    $region9: #{titanic_forward.1} parent=1 // pred_fallthru
      _
    // Predicated region
    $region10: #{titanic_forward.1} parent=1 // pred_check
      _
    $region11: #{titanic_forward.1} parent=1 // pred_check_branch
      %29 = sbr.rel (0) target = $region13
    $region12: #{titanic_forward.1} parent=1 // pred_region
      _
    $region13: #{titanic_forward.1} parent=1 // pred_fallthru
      _
    // Predicated region
    $region14: #{titanic_forward.1} parent=1 // pred_check
      _
    $region15: #{titanic_forward.1} parent=1 // pred_check_branch
      %31 = sbr.rel (0) target = $region17
    $region16: #{titanic_forward.1} parent=1 // pred_region
      %s33 = ssub.s32 2048, 2048
      %34 = vsyncadd [#allocation6], %s33
      %s35 = sshll.u32 [#allocation5], 4
      %s36 = int_to_ptr.vmem [resolvable:$true] %s35
      %41 = dma.hbm_to_vmem [thread:$0]  %s3, 2048, %s36, [#allocation6], 128, 128, 8
    $region17: #{titanic_forward.1} parent=1 // pred_fallthru
      _
    // Predicated region
    $region18: #{titanic_forward.1} parent=1 // pred_check
      _
    $region19: #{titanic_forward.1} parent=1 // pred_check_branch
      %43 = sbr.rel (0) target = $region21
    $region20: #{titanic_forward.1} parent=1 // pred_region
      _
    $region21: #{titanic_forward.1} parent=1 // pred_fallthru
      _
    // Predicated region
    $region22: #{titanic_forward.1} parent=1 // pred_check
      _
    $region23: #{titanic_forward.1} parent=1 // pred_check_branch
      %45 = sbr.rel (0) target = $region25
    $region24: #{titanic_forward.1} parent=1 // pred_region
      _
    $region25: #{titanic_forward.1} parent=1 // pred_fallthru
      _
    // Predicated region
    $region26: #{titanic_forward.1} parent=1 // pred_check
      _
    $region27: #{titanic_forward.1} parent=1 // pred_check_branch
      %47 = sbr.rel (0) target = $region29
    $region28: #{titanic_forward.1} parent=1 // pred_region
      _
    $region29: #{titanic_forward.1} parent=1 // pred_fallthru
      _
    // Predicated region
    $region30: #{titanic_forward.1} parent=1 // pred_check
      _
    $region31: #{titanic_forward.1} parent=1 // pred_check_branch
      %49 = sbr.rel (0) target = $region33
    $region32: #{titanic_forward.1} parent=1 // pred_region
      %50 = dma.done [#allocation4], 128
    $region33: #{titanic_forward.1} parent=1 // pred_fallthru
      _
    // Predicated region
    $region34: #{titanic_forward.1} parent=1 // pred_check
      _
    $region35: #{titanic_forward.1} parent=1 // pred_check_branch
      %52 = sbr.rel (0) target = $region37
    $region36: #{titanic_forward.1} parent=1 // pred_region
      %53 = dma.done [#allocation6], 2048
    $region37: #{titanic_forward.1} parent=1 // pred_fallthru
      _
    %v54 = vld [vmem:[#allocation3] sm:$0xff]
    %v55 = vld [vmem:[%s1] sm:$0xff]
    %v56 = vld [vmem:[%s2] sm:$0x1]
    %v58 = vlaneseq
    %v59 = vshrl.u32 %v58, 7
    %v60 = vsub.s32 0, %v59
    %v61 = vrot.slane %v56, %v60
    %vm63 = vcmask 64512
    %v65 = vsel %vm63, %v54, 0
    %67 = vmatprep.subr.mxu0 0.0
    %68 = vmatpush1.msra.mxu0 %v55
    %69 = vmatprep.subr.mxu0 0.0
    %70 = vmatpush1.msra.mxu0 0.0
    %71 = vmatprep.subr.mxu0 0.0
    %72 = vmatpush1.msra.mxu0 0.0
    %73 = vmatprep.subr.mxu0 0.0
    %74 = vmatpush1.msra.mxu0 0.0
    %75 = vmatprep.subr.mxu0 0.0
    %76 = vmatpush1.msra.mxu0 0.0
    %77 = vmatprep.subr.mxu0 0.0
    %78 = vmatpush1.msra.mxu0 0.0
    %79 = vmatprep.subr.mxu0 0.0
    %80 = vmatpush1.msra.mxu0 0.0
    %81 = vmatprep.subr.mxu0 0.0
    %82 = vmatpush1.msra.mxu0 0.0
    %83 = vmatprep.subr.mxu0 0.0
    %84 = vmatpush1.msra.mxu0 0.0
    %85 = vmatprep.subr.mxu0 0.0
    %86 = vmatpush1.msra.mxu0 0.0
    %87 = vmatprep.subr.mxu0 0.0
    %88 = vmatpush1.msra.mxu0 0.0
    %89 = vmatprep.subr.mxu0 0.0
    %90 = vmatpush1.msra.mxu0 0.0
    %91 = vmatprep.subr.mxu0 0.0
    %92 = vmatpush1.msra.mxu0 0.0
    %93 = vmatprep.subr.mxu0 0.0
    %94 = vmatpush1.msra.mxu0 0.0
    %95 = vmatprep.subr.mxu0 0.0
    %96 = vmatpush1.msra.mxu0 0.0
    %97 = vmatprep.subr.mxu0 0.0
    %98 = vmatpush1.msra.mxu0 0.0
    %99 = vmatprep.subr.mxu0 0.0
    %100 = vmatpush1.msra.mxu0 0.0
    %101 = vmatprep.subr.mxu0 0.0
    %102 = vmatpush1.msra.mxu0 0.0
    %103 = vmatprep.subr.mxu0 0.0
    %104 = vmatpush1.msra.mxu0 0.0
    %105 = vmatprep.subr.mxu0 0.0
    %106 = vmatpush1.msra.mxu0 0.0
    %107 = vmatprep.subr.mxu0 0.0
    %108 = vmatpush1.msra.mxu0 0.0
    %109 = vmatprep.subr.mxu0 0.0
    %110 = vmatpush1.msra.mxu0 0.0
    %111 = vmatprep.subr.mxu0 0.0
    %112 = vmatpush1.msra.mxu0 0.0
    %113 = vmatprep.subr.mxu0 0.0
    %114 = vmatpush1.msra.mxu0 0.0
    %115 = vmatprep.subr.mxu0 0.0
    %116 = vmatpush1.msra.mxu0 0.0
    %117 = vmatprep.subr.mxu0 0.0
    %118 = vmatpush1.msra.mxu0 0.0
    %119 = vmatprep.subr.mxu0 0.0
    %120 = vmatpush1.msra.mxu0 0.0
    %121 = vmatprep.subr.mxu0 0.0
    %122 = vmatpush1.msra.mxu0 0.0
    %123 = vmatprep.subr.mxu0 0.0
    %124 = vmatpush1.msra.mxu0 0.0
    %125 = vmatprep.subr.mxu0 0.0
    %126 = vmatpush1.msra.mxu0 0.0
    %127 = vmatprep.subr.mxu0 0.0
    %128 = vmatpush1.msra.mxu0 0.0
    %129 = vmatprep.subr.mxu0 0.0
    %130 = vmatpush1.msra.mxu0 0.0
    %131 = vmatprep.mubr.f32.mxu0 0.0
    %132 = vmatmul.mubr.f32.gmra.mrb[0].mxu0 %v65
    %v133 = vpop.f32.mrb[0].mxu0
    %v134 = vadd.f32 %v61, %v133
    %v135 = vpop.f32.mrb[0].mxu0
    %136 = vdwg.mxu0
    %v137 = vmax.f32 %v134, 0.0
    %v138 = vld [vmem:[#allocation5] sm:$0xff]
    %v139 = vld [vmem:[#allocation5 + $0x8] sm:$0xff]
    %v140 = vld [vmem:[#allocation5 + $0x10] sm:$0xff]
    %v141 = vld [vmem:[#allocation5 + $0x18] sm:$0xff]
    %v142 = vld [vmem:[#allocation5 + $0x20] sm:$0xff]
    %v143 = vld [vmem:[#allocation5 + $0x28] sm:$0xff]
    %v144 = vld [vmem:[#allocation5 + $0x30] sm:$0xff]
    %v145 = vld [vmem:[#allocation5 + $0x38] sm:$0xff]
    %v146 = vld [vmem:[#allocation5 + $0x40] sm:$0xff]
    %v147 = vld [vmem:[#allocation5 + $0x48] sm:$0xff]
    %v148 = vld [vmem:[#allocation5 + $0x50] sm:$0xff]
    %v149 = vld [vmem:[#allocation5 + $0x58] sm:$0xff]
    %v150 = vld [vmem:[#allocation5 + $0x60] sm:$0xff]
    %v151 = vld [vmem:[#allocation5 + $0x68] sm:$0xff]
    %v152 = vld [vmem:[#allocation5 + $0x70] sm:$0xff]
    %v153 = vld [vmem:[#allocation5 + $0x78] sm:$0xff]
    %v154 = vld [vmem:[%s4] sm:$0x1]
    %v156 = vlaneseq
    %v157 = vshrl.u32 %v156, 7
    %v158 = vsub.s32 0, %v157
    %v159 = vrot.slane %v154, %v158
    %161 = vmatprep.subr.mxu0 0.0
    %162 = vmatpush1.msra.mxu0 %v138
    %163 = vmatprep.subr.mxu0 0.0
    %164 = vmatpush1.msra.mxu0 %v139
    %165 = vmatprep.subr.mxu0 0.0
    %166 = vmatpush1.msra.mxu0 %v140
    %167 = vmatprep.subr.mxu0 0.0
    %168 = vmatpush1.msra.mxu0 %v141
    %169 = vmatprep.subr.mxu0 0.0
    %170 = vmatpush1.msra.mxu0 %v142
    %171 = vmatprep.subr.mxu0 0.0
    %172 = vmatpush1.msra.mxu0 %v143
    %173 = vmatprep.subr.mxu0 0.0
    %174 = vmatpush1.msra.mxu0 %v144
    %175 = vmatprep.subr.mxu0 0.0
    %176 = vmatpush1.msra.mxu0 %v145
    %177 = vmatprep.subr.mxu0 0.0
    %178 = vmatpush1.msra.mxu0 %v146
    %179 = vmatprep.subr.mxu0 0.0
    %180 = vmatpush1.msra.mxu0 %v147
    %181 = vmatprep.subr.mxu0 0.0
    %182 = vmatpush1.msra.mxu0 %v148
    %183 = vmatprep.subr.mxu0 0.0
    %184 = vmatpush1.msra.mxu0 %v149
    %185 = vmatprep.subr.mxu0 0.0
    %186 = vmatpush1.msra.mxu0 %v150
    %187 = vmatprep.subr.mxu0 0.0
    %188 = vmatpush1.msra.mxu0 %v151
    %189 = vmatprep.subr.mxu0 0.0
    %190 = vmatpush1.msra.mxu0 %v152
    %191 = vmatprep.subr.mxu0 0.0
    %192 = vmatpush1.msra.mxu0 %v153
    %193 = vmatprep.subr.mxu0 0.0
    %194 = vmatpush1.msra.mxu0 0.0
    %195 = vmatprep.subr.mxu0 0.0
    %196 = vmatpush1.msra.mxu0 0.0
    %197 = vmatprep.subr.mxu0 0.0
    %198 = vmatpush1.msra.mxu0 0.0
    %199 = vmatprep.subr.mxu0 0.0
    %200 = vmatpush1.msra.mxu0 0.0
    %201 = vmatprep.subr.mxu0 0.0
    %202 = vmatpush1.msra.mxu0 0.0
    %203 = vmatprep.subr.mxu0 0.0
    %204 = vmatpush1.msra.mxu0 0.0
    %205 = vmatprep.subr.mxu0 0.0
    %206 = vmatpush1.msra.mxu0 0.0
    %207 = vmatprep.subr.mxu0 0.0
    %208 = vmatpush1.msra.mxu0 0.0
    %209 = vmatprep.subr.mxu0 0.0
    %210 = vmatpush1.msra.mxu0 0.0
    %211 = vmatprep.subr.mxu0 0.0
    %212 = vmatpush1.msra.mxu0 0.0
    %213 = vmatprep.subr.mxu0 0.0
    %214 = vmatpush1.msra.mxu0 0.0
    %215 = vmatprep.subr.mxu0 0.0
    %216 = vmatpush1.msra.mxu0 0.0
    %217 = vmatprep.subr.mxu0 0.0
    %218 = vmatpush1.msra.mxu0 0.0
    %219 = vmatprep.subr.mxu0 0.0
    %220 = vmatpush1.msra.mxu0 0.0
    %221 = vmatprep.subr.mxu0 0.0
    %222 = vmatpush1.msra.mxu0 0.0
    %223 = vmatprep.subr.mxu0 0.0
    %224 = vmatpush1.msra.mxu0 0.0
    %225 = vmatprep.mubr.f32.mxu0 0.0
    %226 = vmatmul.mubr.f32.gmra.mrb[0].mxu0 %v137
    %v227 = vpop.f32.mrb[0].mxu0
    %v228 = vadd.f32 %v159, %v227
    %v229 = vpop.f32.mrb[0].mxu0
    %230 = vdwg.mxu0
    %v231 = vmax.f32 %v228, 0.0
    %v232 = vld [vmem:[%s5] sm:$0x1]
    %v234 = vlaneseq
    %v235 = vshrl.u32 %v234, 7
    %v236 = vsub.s32 0, %v235
    %v237 = vrot.slane %v232, %v236
    %v239 = vmul.f32 %v231, %v237
    %240 = vadd.xlane.f32.xlu0 %v239
    %v241 = vpop.xlane.xlu0 %240
    %v242 = vld [vmem:[#allocation2] sm:$0x1]
    %v244 = vlaneseq
    %v245 = vshrl.u32 %v244, 7
    %v246 = vsub.s32 0, %v245
    %v247 = vrot.slane %v242, %v246
    %v249 = vadd.f32 %v241, %v247
    %v250 = vxor.u32 %v249, 2147483648
    %v251 = vmul.f32 %v250, 1.442695
    %v252 = vpow.pop %v251
    %v253 = vadd.f32 %v252, 1.0
    %v254 = vrcp.pop %v253
    %v255 = vmul.f32 1.0, %v254
    %vm256 = vcmask 7168
    %257 = vst.msk [vmem:[%s7] sm:$0xff] %vm256, %v255
    // Predicated region
    $region38: #{titanic_forward.1} parent=1 // pred_check
      _
    $region39: #{titanic_forward.1} parent=1 // pred_check_branch
      %259 = sbr.rel (0) target = $region41
    $region40: #{titanic_forward.1} parent=1 // pred_region
      _
    $region41: #{titanic_forward.1} parent=1 // pred_fallthru
      _
    // Predicated region
    $region42: #{titanic_forward.1} parent=1 // pred_check
      _
    $region43: #{titanic_forward.1} parent=1 // pred_check_branch
      %261 = sbr.rel (0) target = $region45
    $region44: #{titanic_forward.1} parent=1 // pred_region
      _
    $region45: #{titanic_forward.1} parent=1 // pred_fallthru
      _
    %262 = vsyncpa [#allocation4], 1
    %263 = vsyncpa [#allocation6], 1

</llo_original>
